<compile_context>
chip_gen: v5e
topology: v5e:2x2
jax: 0.10.0
libtpu: 0.0.40
codegen_flags: <defaults>
</compile_context>

<pallas_src>
import functools

import jax
import jax.numpy as jnp
from jax.experimental import pallas as pl
from jax.experimental.pallas import tpu as pltpu


def _spatial_transformer_kernel(base_ref, flow_ref, src_ref, out_ref, *,
                                sy, sx, A, B, C, swap):
    # base_ref : (2, 1, TP)           pre-scaled row*sy / col*sx, lane-dense
    # flow_ref : (1, 2, 1, TP)        dy / dx, lane-dense
    # src_ref  : (1, C, A, B)         resident across p tiles (B = MXU dim)
    # out_ref  : (1, C, TP)
    TP = out_ref.shape[2]

    # Source-space sample coordinates (one FMA each), lane-dense (1, TP).
    iy = base_ref[0] + jnp.float32(sy) * flow_ref[0, 0]
    ix = base_ref[1] + jnp.float32(sx) * flow_ref[0, 1]
    coord_a = ix if swap else iy          # stage-2 (VPU reduce) axis coordinate
    coord_b = iy if swap else ix          # stage-1 (MXU contraction) coordinate

    # Bilinear "hat" weights, built transposed: source coordinate in sublanes,
    # output pixel p in lanes.  Out-of-bounds samples get weight 0 everywhere,
    # reproducing padding_mode='zeros' exactly.
    qa = jax.lax.broadcasted_iota(jnp.int32, (A, TP), 0).astype(jnp.float32)
    qb = jax.lax.broadcasted_iota(jnp.int32, (B, TP), 0).astype(jnp.float32)
    wa_t = jnp.maximum(1.0 - jnp.abs(qa - coord_a), 0.0)       # (A, TP)
    wb_t = jnp.maximum(1.0 - jnp.abs(qb - coord_b), 0.0)       # (B, TP)

    # Stage 1: single batched MXU matmul over all channels (fills M = C*A).
    src2d = src_ref[0].astype(jnp.float32).reshape(C * A, B)   # (C*A, B)
    b = jnp.dot(src2d, wb_t, preferred_element_type=jnp.float32)  # (C*A, TP)

    # Stage 2: elementwise multiply + sublane reduce; output stays lane-dense.
    out = jnp.sum(b.reshape(C, A, TP) * wa_t[None, :, :], axis=1)  # (C, TP)

    # Single unmasked full-tile store.
    out_ref[0] = out.astype(out_ref.dtype)


def _pick_tile_p(P, A, B, C):
    """Largest lane tile (multiple of 128) keeping the working set bounded."""
    p128 = pl.cdiv(P, 128) * 128
    # Per-lane f32 bytes of in-kernel temporaries: iotas + weights + matmul
    # output + stage-2 product + output tile.
    per_lane = 4 * (2 * (A + B) + 2 * C * A + C)
    tile = 128
    for cand in (1024, 512, 256, 128):
        if cand * per_lane <= (8 << 20):
            tile = cand
            break
    while tile > 128 and tile > p128:        # don't pad small problems up
        tile //= 2
    return tile


def spatial_transformer(src, flow, mode="bilinear"):
    """Pallas equivalent of SpatialTransformer.forward (2-D flow, bilinear)."""
    # TODO(synk): only mode='bilinear' is implemented; 'nearest' not supported.
    assert mode == "bilinear"
    N, C, H_in, W_in = src.shape
    Nf, two, H_out, W_out = flow.shape
    assert Nf == N and two == 2
    P = H_out * W_out

    # The module normalizes with the flow's spatial shape and grid_sample
    # (align_corners=True) un-normalizes with src's; the two cancel to one
    # scale per axis.
    # TODO(synk): H_out==1 / W_out==1 divides by zero in the reference module
    # (inf/nan coords); not reproduced here.
    sy = (H_in - 1) / (H_out - 1) if H_out > 1 else 0.0
    sx = (W_in - 1) / (W_out - 1) if W_out > 1 else 0.0

    # Contract the *larger* spatial dim on the MXU; the smaller one is the
    # stage-2 VPU multiply + sublane reduce.
    swap = H_in > W_in
    if swap:
        src_k = jnp.swapaxes(src, 2, 3)      # (N, C, W_in, H_in)
        A, B = W_in, H_in
    else:
        src_k = src
        A, B = H_in, W_in

    tile = _pick_tile_p(P, A, B, C)
    P_pad = pl.cdiv(P, tile) * tile
    n_pt = P_pad // tile

    # Grid-invariant base coordinates, pre-scaled, lane-dense over p.  Padded
    # lanes (p >= P) produce values that are sliced off below.
    p_idx = jnp.arange(P_pad, dtype=jnp.int32)
    base_row = (p_idx // W_out).astype(jnp.float32) * jnp.float32(sy)
    base_col = (p_idx % W_out).astype(jnp.float32) * jnp.float32(sx)
    base = jnp.stack([base_row, base_col], axis=0).reshape(2, 1, P_pad)

    flow_flat = flow.reshape(N, 2, P)
    if P_pad != P:
        flow_flat = jnp.pad(flow_flat, ((0, 0), (0, 0), (0, P_pad - P)))
    flow_flat = flow_flat.reshape(N, 2, 1, P_pad)

    # Explicit VMEM budget: double-buffered tiles + resident src block +
    # in-kernel temporaries, 2x headroom, capped well under v7x's 64 MiB.
    itm = 4 * tile * (2 * (A + B) + 2 * C * A + C)
    tiles = 4 * (2 * tile + 2 * tile + C * tile)
    src_blk = 4 * C * A * B
    est = 2 * (tiles + src_blk) + itm
    vmem_limit = int(min(56 << 20, max(32 << 20, 2 * est)))

    kernel = functools.partial(_spatial_transformer_kernel,
                               sy=sy, sx=sx, A=A, B=B, C=C, swap=swap)

    # TODO(synk): on v7x with very large C*H_in*W_in the resident src block
    # should additionally be single-buffered / C-tiled; not needed here.
    out_flat = pl.pallas_call(
        kernel,
        out_shape=jax.ShapeDtypeStruct((N, C, P_pad), src.dtype),
        grid=(N, n_pt),
        in_specs=[
            # base: batch-invariant, tiled over p.
            pl.BlockSpec((2, 1, tile), lambda n, t: (0, 0, t)),
            # flow: per-batch, tiled over p.
            pl.BlockSpec((1, 2, 1, tile), lambda n, t: (n, 0, 0, t)),
            # src: per-batch, p-tile-invariant -> resident across p tiles.
            pl.BlockSpec((1, C, A, B), lambda n, t: (n, 0, 0, 0)),
        ],
        out_specs=pl.BlockSpec((1, C, tile), lambda n, t: (n, 0, t)),
        compiler_params=pltpu.CompilerParams(
            dimension_semantics=("parallel", "parallel"),
            vmem_limit_bytes=vmem_limit),
    )(base, flow_flat, src_k)

    out = out_flat[:, :, :P] if P_pad != P else out_flat
    return out.reshape(N, C, H_out, W_out)


def _reference(src, flow):
    """Pure-JAX reference of grid_sample(bilinear, align_corners=True, zeros)."""
    N, C, H_in, W_in = src.shape
    H_out, W_out = flow.shape[2], flow.shape[3]
    row = jnp.arange(H_out, dtype=jnp.float32)[:, None]
    col = jnp.arange(W_out, dtype=jnp.float32)[None, :]
    y = row + flow[:, 0]
    x = col + flow[:, 1]
    y_norm = 2.0 * (y / (H_out - 1) - 0.5)
    x_norm = 2.0 * (x / (W_out - 1) - 0.5)
    iy = (y_norm + 1.0) * 0.5 * (H_in - 1)
    ix = (x_norm + 1.0) * 0.5 * (W_in - 1)
    y0 = jnp.floor(iy)
    x0 = jnp.floor(ix)
    wy1 = iy - y0
    wy0 = 1.0 - wy1
    wx1 = ix - x0
    wx0 = 1.0 - wx1

    def gather(yi, xi):
        valid = (yi >= 0) & (yi < H_in) & (xi >= 0) & (xi < W_in)
        yc = jnp.clip(yi, 0, H_in - 1).astype(jnp.int32)
        xc = jnp.clip(xi, 0, W_in - 1).astype(jnp.int32)
        vals = jax.vmap(lambda s, yy, xx: s[:, yy, xx])(src, yc, xc)
        return vals * valid[:, None].astype(src.dtype)

    return (gather(y0, x0) * (wy0 * wx0)[:, None]
            + gather(y0, x0 + 1.0) * (wy0 * wx1)[:, None]
            + gather(y0 + 1.0, x0) * (wy1 * wx0)[:, None]
            + gather(y0 + 1.0, x0 + 1.0) * (wy1 * wx1)[:, None])


if __name__ == "__main__":
    key = jax.random.PRNGKey(0)
    k_src, k_flow, k_src2, k_flow2 = jax.random.split(key, 4)

    # Primary case: square, 128-divisible P.
    N, C, H, W = 2, 4, 16, 16
    src = jax.random.normal(k_src, (N, C, H, W), dtype=jnp.float32)
    # flow with a few pixels of displacement (exercises zeros-padding path)
    flow = 2.0 * jax.random.normal(k_flow, (N, 2, H, W), dtype=jnp.float32)

    out = spatial_transformer(src, flow)
    out = jax.block_until_ready(out)
    ref = _reference(src, flow)
    assert out.shape == (N, C, H, W)
    assert jnp.allclose(out, ref, atol=1e-3, rtol=1e-3), (
        f"max err {jnp.max(jnp.abs(out - ref))}")

    # Secondary case: non-square src (exercises the MXU-axis swap) and a
    # non-128-divisible output (exercises the lane padding path).
    src2 = jax.random.normal(k_src2, (N, C, 24, 16), dtype=jnp.float32)
    flow2 = 2.0 * jax.random.normal(k_flow2, (N, 2, 12, 10), dtype=jnp.float32)
    out2 = jax.block_until_ready(spatial_transformer(src2, flow2))
    ref2 = _reference(src2, flow2)
    assert out2.shape == (N, C, 12, 10)
    assert jnp.allclose(out2, ref2, atol=1e-3, rtol=1e-3), (
        f"max err {jnp.max(jnp.abs(out2 - ref2))}")

    print("KERNEL_OK")
</pallas_src>

<mosaic_0001>
module attributes {stable_mosaic.version = 11 : i64} {
  func.func @_spatial_transformer_kernel(%arg0: i32, %arg1: i32, %arg2: memref<2x1x256xf32, #tpu.memory_space<vmem>>, %arg3: memref<1x2x1x256xf32, #tpu.memory_space<vmem>>, %arg4: memref<1x4x16x16xf32, #tpu.memory_space<vmem>>, %arg5: memref<1x4x256xf32, #tpu.memory_space<vmem>>) attributes {dimension_semantics = [#tpu.dimension_semantics<parallel>, #tpu.dimension_semantics<parallel>], iteration_bounds = array<i64: 2, 1>, scalar_prefetch = 0 : i64, scratch_operands = 0 : i64, tpu.core_type = #tpu.core_type<tc>, window_params = [{transform_indices = @transform_0, window_bounds = array<i64: 2, 1, 256>}, {transform_indices = @transform_1, window_bounds = array<i64: 1, 2, 1, 256>}, {transform_indices = @transform_2, window_bounds = array<i64: 1, 4, 16, 16>}, {transform_indices = @transform_3, window_bounds = array<i64: 1, 4, 256>}]} {
    %c0 = arith.constant 0 : index
    %c0_0 = arith.constant 0 : index
    %c0_1 = arith.constant 0 : index
    %0 = vector.load %arg2[%c0, %c0_0, %c0_1] : memref<2x1x256xf32, #tpu.memory_space<vmem>>, vector<1x1x256xf32>
    %1 = vector.shape_cast %0 : vector<1x1x256xf32> to vector<1x256xf32>
    %c0_2 = arith.constant 0 : index
    %c0_3 = arith.constant 0 : index
    %c0_4 = arith.constant 0 : index
    %c0_5 = arith.constant 0 : index
    %2 = vector.load %arg3[%c0_2, %c0_3, %c0_4, %c0_5] : memref<1x2x1x256xf32, #tpu.memory_space<vmem>>, vector<1x1x1x256xf32>
    %3 = vector.shape_cast %2 : vector<1x1x1x256xf32> to vector<1x256xf32>
    %cst = arith.constant 1.000000e+00 : f32
    %4 = vector.broadcast %cst : f32 to vector<1x256xf32>
    %5 = arith.mulf %4, %3 : vector<1x256xf32>
    %6 = arith.addf %1, %5 : vector<1x256xf32>
    %c1 = arith.constant 1 : index
    %c0_6 = arith.constant 0 : index
    %c0_7 = arith.constant 0 : index
    %7 = vector.load %arg2[%c1, %c0_6, %c0_7] : memref<2x1x256xf32, #tpu.memory_space<vmem>>, vector<1x1x256xf32>
    %8 = vector.shape_cast %7 : vector<1x1x256xf32> to vector<1x256xf32>
    %c0_8 = arith.constant 0 : index
    %c1_9 = arith.constant 1 : index
    %c0_10 = arith.constant 0 : index
    %c0_11 = arith.constant 0 : index
    %9 = vector.load %arg3[%c0_8, %c1_9, %c0_10, %c0_11] : memref<1x2x1x256xf32, #tpu.memory_space<vmem>>, vector<1x1x1x256xf32>
    %10 = vector.shape_cast %9 : vector<1x1x1x256xf32> to vector<1x256xf32>
    %cst_12 = arith.constant 1.000000e+00 : f32
    %11 = vector.broadcast %cst_12 : f32 to vector<1x256xf32>
    %12 = arith.mulf %11, %10 : vector<1x256xf32>
    %13 = arith.addf %8, %12 : vector<1x256xf32>
    %14 = tpu.iota {dimensions = array<i32: 0>} : vector<16x256xi32>
    %15 = arith.sitofp %14 : vector<16x256xi32> to vector<16x256xf32>
    %16 = tpu.iota {dimensions = array<i32: 0>} : vector<16x256xi32>
    %17 = arith.sitofp %16 : vector<16x256xi32> to vector<16x256xf32>
    %18 = vector.broadcast %6 : vector<1x256xf32> to vector<16x256xf32>
    %19 = arith.subf %15, %18 : vector<16x256xf32>
    %20 = math.absf %19 : vector<16x256xf32>
    %cst_13 = arith.constant 1.000000e+00 : f32
    %21 = vector.broadcast %cst_13 : f32 to vector<16x256xf32>
    %22 = arith.subf %21, %20 : vector<16x256xf32>
    %cst_14 = arith.constant 0.000000e+00 : f32
    %23 = vector.broadcast %cst_14 : f32 to vector<16x256xf32>
    %24 = arith.maximumf %22, %23 : vector<16x256xf32>
    %25 = vector.broadcast %13 : vector<1x256xf32> to vector<16x256xf32>
    %26 = arith.subf %17, %25 : vector<16x256xf32>
    %27 = math.absf %26 : vector<16x256xf32>
    %cst_15 = arith.constant 1.000000e+00 : f32
    %28 = vector.broadcast %cst_15 : f32 to vector<16x256xf32>
    %29 = arith.subf %28, %27 : vector<16x256xf32>
    %cst_16 = arith.constant 0.000000e+00 : f32
    %30 = vector.broadcast %cst_16 : f32 to vector<16x256xf32>
    %31 = arith.maximumf %29, %30 : vector<16x256xf32>
    %c0_17 = arith.constant 0 : index
    %c0_18 = arith.constant 0 : index
    %c0_19 = arith.constant 0 : index
    %c0_20 = arith.constant 0 : index
    %32 = vector.load %arg4[%c0_17, %c0_18, %c0_19, %c0_20] : memref<1x4x16x16xf32, #tpu.memory_space<vmem>>, vector<1x4x16x16xf32>
    %33 = vector.shape_cast %32 : vector<1x4x16x16xf32> to vector<4x16x16xf32>
    %34 = vector.shape_cast %33 : vector<4x16x16xf32> to vector<64x16xf32>
    %cst_21 = arith.constant dense<0.000000e+00> : vector<64x256xf32>
    %35 = tpu.matmul %34, %31, %cst_21 {dimension_numbers = #tpu.dot_dimension_numbers<[1], [0], [0], [1], [0, 0, 1, 1], [], []>} : vector<64x16xf32>, vector<16x256xf32>, vector<64x256xf32> -> vector<64x256xf32>
    %36 = vector.shape_cast %35 : vector<64x256xf32> to vector<4x16x256xf32>
    %37 = vector.shape_cast %24 : vector<16x256xf32> to vector<1x16x256xf32>
    %38 = vector.broadcast %37 : vector<1x16x256xf32> to vector<4x16x256xf32>
    %39 = arith.mulf %36, %38 : vector<4x16x256xf32>
    %cst_22 = arith.constant dense<0.000000e+00> : vector<4x256xf32>
    %40 = vector.multi_reduction <add>, %39, %cst_22 [1] : vector<4x16x256xf32> to vector<4x256xf32>
    %c0_23 = arith.constant 0 : index
    %c0_24 = arith.constant 0 : index
    %c0_25 = arith.constant 0 : index
    %41 = vector.load %arg5[%c0_23, %c0_24, %c0_25] : memref<1x4x256xf32, #tpu.memory_space<vmem>>, vector<1x4x256xf32>
    %42 = vector.shape_cast %41 : vector<1x4x256xf32> to vector<4x256xf32>
    %43 = vector.shape_cast %40 : vector<4x256xf32> to vector<1x4x256xf32>
    tpu.vector_store %arg5[%c0_23, %c0_24, %c0_25], %43 {strides = array<i32>} : memref<1x4x256xf32, #tpu.memory_space<vmem>>, vector<1x4x256xf32>,
    return
  }
  func.func @transform_0(%arg0: i32, %arg1: i32) -> (i32, i32, i32) {
    %c0_i32 = arith.constant 0 : i32
    %c0_i32_0 = arith.constant 0 : i32
    %c0_i32_1 = arith.constant 0 : i32
    return %c0_i32, %c0_i32_0, %arg1 : i32, i32, i32
  }
  func.func @transform_1(%arg0: i32, %arg1: i32) -> (i32, i32, i32, i32) {
    %c0_i32 = arith.constant 0 : i32
    %c0_i32_0 = arith.constant 0 : i32
    %c0_i32_1 = arith.constant 0 : i32
    return %arg0, %c0_i32, %c0_i32_0, %arg1 : i32, i32, i32, i32
  }
  func.func @transform_2(%arg0: i32, %arg1: i32) -> (i32, i32, i32, i32) {
    %c0_i32 = arith.constant 0 : i32
    %c0_i32_0 = arith.constant 0 : i32
    %c0_i32_1 = arith.constant 0 : i32
    %c0_i32_2 = arith.constant 0 : i32
    return %arg0, %c0_i32, %c0_i32_0, %c0_i32_1 : i32, i32, i32, i32
  }
  func.func @transform_3(%arg0: i32, %arg1: i32) -> (i32, i32, i32) {
    %c0_i32 = arith.constant 0 : i32
    %c0_i32_0 = arith.constant 0 : i32
    return %arg0, %c0_i32, %arg1 : i32, i32, i32
  }
}

</mosaic_0001>

<llo_original>
// kernel: tpu_custom_call.1
$region0: #{tpu_custom_call.1}
  #allocation0 [shape = 'u32[]', space=smem, size = 0x4, offset = 0x4, fixed_abs, tag = 'smem constant byte address 0x4 - core index']
  #allocation1 [shape = 'u32[72,128]{1,0:T(1,128)}', space=vmem, size = 0x9000, scoped, tag = 'internal scratch']
  %s0 = inlined_call_operand.hbm [shape: f32[2,1,256], index: 0, kind: input, shape index: {}]
  %s1 = inlined_call_operand.hbm [shape: f32[2,2,1,256], index: 1, kind: input, shape index: {}]
  %s2 = inlined_call_operand.hbm [shape: f32[2,4,16,16], index: 2, kind: input, shape index: {}]
  %s3 = inlined_call_operand.hbm [shape: f32[2,4,256], index: 3, kind: output, shape index: {}]
  %s4 = sld [smem:[#allocation0]]
  $region57: #{tpu_custom_call.1} parent=0
    _
  %s6 = ssub.s32 1, %s4
  %s7 = scalar_select 0, %s6, %s4
  $region1: #{tpu_custom_call.1} parent=0
    #allocation2 [shape = 'u8[2048]{0}', space=vmem, size = 0x800, scoped, tag = 'input window, operand 0, single buffered']
    #allocation3 [shape = 's32[2]{0}', space=sflag, size = 0x8, scoped, tag = 'scoped memory for tpu_custom_call.1']
    #allocation4 [shape = 's32[2]{0}', space=sflag, size = 0x8, scoped, tag = 'scoped memory for tpu_custom_call.1']
    #allocation5 [shape = 'u8[4096]{0}', space=vmem, size = 0x1000, scoped, tag = 'input window, operand 1']
    #allocation6 [shape = 's32[2]{0}', space=sflag, size = 0x8, scoped, tag = 'scoped memory for tpu_custom_call.1']
    #allocation7 [shape = 'u8[65536]{0}', space=vmem, size = 0x10000, scoped, tag = 'input window, operand 2']
    #allocation8 [shape = 'u8[8192]{0}', space=vmem, size = 0x2000, scoped, tag = 'output window, operand 0']
    %8 = vsyncpa [#allocation3], 0
    %9 = vsyncpa [#allocation6], 0
    %s10 = scalar_lea.sflag [#allocation6], 1
    %11 = vsyncpa %s10, 0
    %12 = vsyncpa [#allocation4], 0
    %s13 = scalar_lea.sflag [#allocation4], 1
    %14 = vsyncpa %s13, 0
    loop: start=0, step=1, limit=4
    $region2: #{tpu_custom_call.1} parent=1 // loop_pre_header
      _
    $region3: #{tpu_custom_call.1} parent=1 // loop_header
      %s16 = sphi 0, %s20
      %p17 = scmp.ge.s32.totalorder %s16, 4
      %s23 = sphi 0, %s35
      %s24 = sphi 0, %s31
      %s25 = sphi 0, %s23
      %s26 = sphi 0, %s24
      %s27 = sphi 0, %s25
      %s28 = sphi 0, %s26
      %s38 = sphi 0, %s40
      %s41 = sphi 0, %s38
      %s42 = sphi 0, %s41
      %s58 = sphi 0, %s42
      %s66 = sphi 0, %s68
      %s69 = sphi 0, %s66
      %s70 = sphi 0, %s69
      %s86 = sphi 0, %s70
      %s92 = sphi 0, %s94
      %s95 = sphi 0, %s92
      %s96 = sphi 0, %s95
      %s112 = sphi 0, %s96
      %s120 = sphi 0, %s122
      %s123 = sphi 0, %s120
      %s124 = sphi 0, %s123
      %s140 = sphi 0, %s124
    $region4: #{tpu_custom_call.1} parent=1 // loop_header_branch
      %19 = sbr.rel (%p17) target = $region8
    $region5: #{tpu_custom_call.1} parent=1 // loop_body
      %s21 = ssub.s32 %s16, 1
      %s22 = ssub.s32 %s16, 2
      %s29 = sadd.s32 1, %s24
      %p30 = scmp.ge.s32.totalorder %s29, 1
      %s31 = scalar_select %p30, 0, %s29
      %s32 = sadd.s32 1, %s23
      %s33 = scalar_select %p30, %s32, %s23
      %p34 = scmp.ge.s32.totalorder %s33, 2
      %s35 = scalar_select %p34, 0, %s33
      %s36 = ssub.s32 %s24, %s31
      %p37 = scmp.eq.s32.totalorder %s36, 0
      %s39 = sadd.s32 %s38, 1
      %s40 = scalar_select %p37, %s38, %s39
      %p43 = pneg %p37
      %p44 = scmp.eq.s32.totalorder %s16, 1
      %p45 = por %p43, %p44
      %p46 = scmp.ne.s32.totalorder %s38, %s41
      %p47 = scmp.eq.s32.totalorder %s16, 0
      %p48 = por %p46, %p47
      %p49 = scmp.ne.s32.totalorder %s38, %s41
      %p50 = scmp.eq.s32.totalorder %s21, 1
      %p51 = por %p49, %p50
      %p52 = scmp.ne.s32.totalorder %s41, %s42
      %p53 = scmp.eq.s32.totalorder %s21, 0
      %p54 = por %p52, %p53
      %p55 = scmp.ne.s32.totalorder %s41, %s42
      %p56 = scmp.eq.s32.totalorder %s22, 1
      %p57 = por %p55, %p56
      %p59 = scmp.ne.s32.totalorder %s42, %s58
      %p60 = scmp.eq.s32.totalorder %s22, 0
      %p61 = por %p59, %p60
      %s62 = ssub.s32 %s23, %s35
      %s63 = ssub.s32 %s24, %s31
      %s64 = sor.u32 %s62, %s63
      %p65 = scmp.eq.s32.totalorder %s64, 0
      %s67 = sadd.s32 %s66, 1
      %s68 = scalar_select %p65, %s66, %s67
      %p71 = pneg %p65
      %p72 = scmp.eq.s32.totalorder %s16, 1
      %p73 = por %p71, %p72
      %p74 = scmp.ne.s32.totalorder %s66, %s69
      %p75 = scmp.eq.s32.totalorder %s16, 0
      %p76 = por %p74, %p75
      %p77 = scmp.ne.s32.totalorder %s66, %s69
      %p78 = scmp.eq.s32.totalorder %s21, 1
      %p79 = por %p77, %p78
      %p80 = scmp.ne.s32.totalorder %s69, %s70
      %p81 = scmp.eq.s32.totalorder %s21, 0
      %p82 = por %p80, %p81
      %p83 = scmp.ne.s32.totalorder %s69, %s70
      %p84 = scmp.eq.s32.totalorder %s22, 1
      %p85 = por %p83, %p84
      %p87 = scmp.ne.s32.totalorder %s70, %s86
      %p88 = scmp.eq.s32.totalorder %s22, 0
      %p89 = por %p87, %p88
      %s90 = ssub.s32 %s23, %s35
      %p91 = scmp.eq.s32.totalorder %s90, 0
      %s93 = sadd.s32 %s92, 1
      %s94 = scalar_select %p91, %s92, %s93
      %p97 = pneg %p91
      %p98 = scmp.eq.s32.totalorder %s16, 1
      %p99 = por %p97, %p98
      %p100 = scmp.ne.s32.totalorder %s92, %s95
      %p101 = scmp.eq.s32.totalorder %s16, 0
      %p102 = por %p100, %p101
      %p103 = scmp.ne.s32.totalorder %s92, %s95
      %p104 = scmp.eq.s32.totalorder %s21, 1
      %p105 = por %p103, %p104
      %p106 = scmp.ne.s32.totalorder %s95, %s96
      %p107 = scmp.eq.s32.totalorder %s21, 0
      %p108 = por %p106, %p107
      %p109 = scmp.ne.s32.totalorder %s95, %s96
      %p110 = scmp.eq.s32.totalorder %s22, 1
      %p111 = por %p109, %p110
      %p113 = scmp.ne.s32.totalorder %s96, %s112
      %p114 = scmp.eq.s32.totalorder %s22, 0
      %p115 = por %p113, %p114
      %s116 = ssub.s32 %s23, %s35
      %s117 = ssub.s32 %s24, %s31
      %s118 = sor.u32 %s116, %s117
      %p119 = scmp.eq.s32.totalorder %s118, 0
      %s121 = sadd.s32 %s120, 1
      %s122 = scalar_select %p119, %s120, %s121
      %p125 = pneg %p119
      %p126 = scmp.eq.s32.totalorder %s16, 1
      %p127 = por %p125, %p126
      %p128 = scmp.ne.s32.totalorder %s120, %s123
      %p129 = scmp.eq.s32.totalorder %s16, 0
      %p130 = por %p128, %p129
      %p131 = scmp.ne.s32.totalorder %s120, %s123
      %p132 = scmp.eq.s32.totalorder %s21, 1
      %p133 = por %p131, %p132
      %p134 = scmp.ne.s32.totalorder %s123, %s124
      %p135 = scmp.eq.s32.totalorder %s21, 0
      %p136 = por %p134, %p135
      %p137 = scmp.ne.s32.totalorder %s123, %s124
      %p138 = scmp.eq.s32.totalorder %s22, 1
      %p139 = por %p137, %p138
      %p141 = scmp.ne.s32.totalorder %s124, %s140
      %p142 = scmp.eq.s32.totalorder %s22, 0
      %p143 = por %p141, %p142
      %p144 = scmp.le.s32.totalorder 1, %s16
      %p145 = scmp.lt.s32.totalorder %s16, 3
      %p146 = pnand %p144, %p145
      %p147 = pneg %p146
      // Predicated region
      $region9: #{tpu_custom_call.1} parent=5 // pred_check
        _
      $region10: #{tpu_custom_call.1} parent=5 // pred_check_branch
        %149 = sbr.rel (%p146) target = $region12
      $region11: #{tpu_custom_call.1} parent=5 // pred_region
        %s150 = ssub.s32 %s16, 1
        // Predicated region
        $region13: #{tpu_custom_call.1} parent=11 // pred_check
          %p151 = pneg %p54
        $region14: #{tpu_custom_call.1} parent=11 // pred_check_branch
          %153 = sbr.rel (%p151) target = $region16
        $region15: #{tpu_custom_call.1} parent=11 // pred_region
          %s154 = smul.u32 2, %s26
          %156 = vsyncadd [#allocation3], 0
          %s157 = scalar_lea.hbm %s0, %s154
          %s158 = sshll.u32 %s157, 4
          %s159 = int_to_ptr.hbm [resolvable:$true] %s158
          %s160 = sshll.u32 [#allocation2], 4
          %s161 = int_to_ptr.vmem [resolvable:$true] %s160
          %166 = dma.hbm_to_vmem [thread:$0]  %s159, 64, %s161, [#allocation3], 32, 32, 2
        $region16: #{tpu_custom_call.1} parent=11 // pred_fallthru
          _
      $region12: #{tpu_custom_call.1} parent=5 // pred_fallthru
        _
      %p167 = scmp.lt.s32.totalorder %s16, 2
      // Predicated region
      $region17: #{tpu_custom_call.1} parent=5 // pred_check
        %p168 = pneg %p167
      $region18: #{tpu_custom_call.1} parent=5 // pred_check_branch
        %170 = sbr.rel (%p168) target = $region20
      $region19: #{tpu_custom_call.1} parent=5 // pred_region
        // Predicated region
        $region21: #{tpu_custom_call.1} parent=19 // pred_check
          %p171 = pneg %p76
        $region22: #{tpu_custom_call.1} parent=19 // pred_check_branch
          %173 = sbr.rel (%p171) target = $region24
        $region23: #{tpu_custom_call.1} parent=19 // pred_region
          %s174 = sand.u32 %s16, 1
          %s175 = scalar_lea.sflag [#allocation6], %s174
          %s176 = sand.u32 %s66, 1
          %s177 = smul.addr %s176, 4
          %s178 = scalar_lea.vmem [#allocation5], %s177
          %s179 = smul.u32 2, %s24
          %181 = vsyncadd %s175, 0
          %s182 = smul.addr %s23, 4
          %s183 = sadd.s32 %s179, %s182
          %s184 = scalar_lea.hbm %s1, %s183
          %s185 = sshll.u32 %s184, 4
          %s186 = int_to_ptr.hbm [resolvable:$true] %s185
          %s187 = sshll.u32 %s178, 4
          %s188 = int_to_ptr.vmem [resolvable:$true] %s187
          %193 = dma.hbm_to_vmem [thread:$0]  %s186, 64, %s188, %s175, 32, 32, 2
        $region24: #{tpu_custom_call.1} parent=19 // pred_fallthru
          _
        // Predicated region
        $region25: #{tpu_custom_call.1} parent=19 // pred_check
          %p194 = pneg %p102
        $region26: #{tpu_custom_call.1} parent=19 // pred_check_branch
          %196 = sbr.rel (%p194) target = $region28
        $region27: #{tpu_custom_call.1} parent=19 // pred_region
          %s197 = sand.u32 %s16, 1
          %s198 = scalar_lea.sflag [#allocation6], %s197
          %s199 = sand.u32 %s92, 1
          %s200 = smul.addr %s199, 64
          %s201 = scalar_lea.vmem [#allocation7], %s200
          %203 = vsyncadd %s198, 0
          %s204 = smul.addr %s23, 8
          %s205 = smul.addr %s204, 8
          %s206 = scalar_lea.hbm %s2, %s205
          %s207 = sshll.u32 %s206, 4
          %s208 = int_to_ptr.hbm [resolvable:$true] %s207
          %s209 = sshll.u32 %s201, 4
          %s210 = int_to_ptr.vmem [resolvable:$true] %s209
          %215 = dma.hbm_to_vmem [thread:$0]  %s208, 1024, %s210, %s198, 128, 128, 8
        $region28: #{tpu_custom_call.1} parent=19 // pred_fallthru
          _
      $region20: #{tpu_custom_call.1} parent=5 // pred_fallthru
        _
      %p216 = scmp.le.s32.totalorder 1, %s16
      %p217 = scmp.lt.s32.totalorder %s16, 3
      %p218 = pnand %p216, %p217
      %p219 = pneg %p218
      // Predicated region
      $region29: #{tpu_custom_call.1} parent=5 // pred_check
        _
      $region30: #{tpu_custom_call.1} parent=5 // pred_check_branch
        %221 = sbr.rel (%p218) target = $region32
      $region31: #{tpu_custom_call.1} parent=5 // pred_region
        %s222 = ssub.s32 %s16, 1
        // Predicated region
        $region33: #{tpu_custom_call.1} parent=31 // pred_check
          %p223 = pneg %p54
        $region34: #{tpu_custom_call.1} parent=31 // pred_check_branch
          %225 = sbr.rel (%p223) target = $region36
        $region35: #{tpu_custom_call.1} parent=31 // pred_region
          %227 = dma.done [#allocation3], 64
        $region36: #{tpu_custom_call.1} parent=31 // pred_fallthru
          _
        %s228 = sand.u32 %s21, 1
        %s229 = scalar_lea.sflag [#allocation6], %s228
        %s230 = sand.u32 %s69, 1
        %s231 = smul.addr %s230, 4
        %s232 = scalar_lea.vmem [#allocation5], %s231
        // Predicated region
        $region37: #{tpu_custom_call.1} parent=31 // pred_check
          %p233 = pneg %p82
        $region38: #{tpu_custom_call.1} parent=31 // pred_check_branch
          %235 = sbr.rel (%p233) target = $region40
        $region39: #{tpu_custom_call.1} parent=31 // pred_region
          %237 = dma.done %s229, 64
        $region40: #{tpu_custom_call.1} parent=31 // pred_fallthru
          _
        %s238 = sand.u32 %s21, 1
        %s239 = scalar_lea.sflag [#allocation6], %s238
        %s240 = sand.u32 %s95, 1
        %s241 = smul.addr %s240, 64
        %s242 = scalar_lea.vmem [#allocation7], %s241
        // Predicated region
        $region41: #{tpu_custom_call.1} parent=31 // pred_check
          %p243 = pneg %p108
        $region42: #{tpu_custom_call.1} parent=31 // pred_check_branch
          %245 = sbr.rel (%p243) target = $region44
        $region43: #{tpu_custom_call.1} parent=31 // pred_region
          %247 = dma.done %s239, 1024
        $region44: #{tpu_custom_call.1} parent=31 // pred_fallthru
          _
        %p248 = pneg %p54
        %p249 = pneg %p51
        %s250 = sand.u32 %s21, 1
        %s251 = scalar_lea.sflag [#allocation6], %s250
        %s252 = sand.u32 %s69, 1
        %s253 = smul.addr %s252, 4
        %s254 = scalar_lea.vmem [#allocation5], %s253
        %p255 = pneg %p82
        %p256 = pneg %p79
        %s257 = sand.u32 %s21, 1
        %s258 = scalar_lea.sflag [#allocation6], %s257
        %s259 = sand.u32 %s95, 1
        %s260 = smul.addr %s259, 64
        %s261 = scalar_lea.vmem [#allocation7], %s260
        %p262 = pneg %p108
        %p263 = pneg %p105
        %p264 = pneg %p136
        %p265 = pneg %p133
        %s266 = sand.u32 %s123, 1
        %s267 = scalar_lea.sflag [#allocation4], %s266
        %s268 = sand.u32 %s123, 1
        %s269 = smul.addr %s268, 8
        %s270 = scalar_lea.vmem [#allocation8], %s269
        %s271 = smul.u32 2, %s26
        %s272 = smul.u32 2, %s26
        %s273 = smul.u32 2, %s26
        %v274 = vld [vmem:[#allocation2] sm:$0x3]
        %v275 = vld [vmem:[%s232] sm:$0x3]
        %v276 = vadd.f32 %v274, %v275
        %s277 = scalar_lea.vmem [#allocation2], 2
        %v278 = vld [vmem:[%s277] sm:$0x3]
        %s279 = scalar_lea.vmem %s232, 2 [#allocation5]
        %v280 = vld [vmem:[%s279] sm:$0x3]
        %v281 = vadd.f32 %v278, %v280
        %v282 = vlaneseq
        %v283 = vshrl.u32 %v282, 7
        %v284 = vadd.s32 %v283, 8
        %v285 = vcvt.s32.f32 %v283
        %v286 = vcvt.s32.f32 %v284
        %v288 = vperm.slane %v276, 0
        %v289 = vperm.slane %v276, 1
        %v292 = vsub.f32 %v285, %v288
        %v293 = vsub.f32 %v285, %v289
        %v294 = vsub.f32 %v286, %v288
        %v295 = vsub.f32 %v286, %v289
        %v296 = vand.u32 2147483647, %v292
        %v297 = vand.u32 2147483647, %v293
        %v298 = vand.u32 2147483647, %v294
        %v299 = vand.u32 2147483647, %v295
        %v300 = vsub.f32 1.0, %v296
        %v301 = vsub.f32 1.0, %v297
        %v302 = vsub.f32 1.0, %v298
        %v303 = vsub.f32 1.0, %v299
        %v304 = vmax.f32 %v300, 0.0
        %v305 = vmax.f32 %v301, 0.0
        %v306 = vmax.f32 %v302, 0.0
        %v307 = vmax.f32 %v303, 0.0
        %v309 = vperm.slane %v281, 0
        %v310 = vperm.slane %v281, 1
        %v313 = vsub.f32 %v285, %v309
        %v314 = vsub.f32 %v285, %v310
        %v315 = vsub.f32 %v286, %v309
        %v316 = vsub.f32 %v286, %v310
        %v317 = vand.u32 2147483647, %v313
        %v318 = vand.u32 2147483647, %v314
        %v319 = vand.u32 2147483647, %v315
        %v320 = vand.u32 2147483647, %v316
        %v321 = vsub.f32 1.0, %v317
        %v322 = vsub.f32 1.0, %v318
        %v323 = vsub.f32 1.0, %v319
        %v324 = vsub.f32 1.0, %v320
        %v325 = vmax.f32 %v321, 0.0
        %v326 = vmax.f32 %v322, 0.0
        %v327 = vmax.f32 %v323, 0.0
        %v328 = vmax.f32 %v324, 0.0
        %v329 = vld [vmem:[%s242] sm:$0xff]
        %v330 = vld [vmem:[%s242 + $0x8] sm:$0xff]
        %v331 = vld [vmem:[%s242 + $0x10] sm:$0xff]
        %v332 = vld [vmem:[%s242 + $0x18] sm:$0xff]
        %v333 = vld [vmem:[%s242 + $0x20] sm:$0xff]
        %v334 = vld [vmem:[%s242 + $0x28] sm:$0xff]
        %v335 = vld [vmem:[%s242 + $0x30] sm:$0xff]
        %v336 = vld [vmem:[%s242 + $0x38] sm:$0xff]
        %vm337 = vcmask 130048
        %v339 = vsel %vm337, %v329, 0
        %v342 = vsel %vm337, %v330, 0
        %v345 = vsel %vm337, %v331, 0
        %v348 = vsel %vm337, %v332, 0
        %v351 = vsel %vm337, %v333, 0
        %v354 = vsel %vm337, %v334, 0
        %v357 = vsel %vm337, %v335, 0
        %v360 = vsel %vm337, %v336, 0
        %362 = vmatpush.msra.mxu0 0.0
        %363 = vmatpush.msra.mxu0 0.0
        %364 = vmatpush.msra.mxu0 0.0
        %365 = vmatpush.msra.mxu0 0.0
        %366 = vmatpush.msra.mxu0 0.0
        %367 = vmatpush.msra.mxu0 0.0
        %368 = vmatpush.msra.mxu0 0.0
        %369 = vmatpush.msra.mxu0 0.0
        %370 = vmatpush.msra.mxu0 0.0
        %371 = vmatpush.msra.mxu0 0.0
        %372 = vmatpush.msra.mxu0 0.0
        %373 = vmatpush.msra.mxu0 0.0
        %374 = vmatpush.msra.mxu0 0.0
        %375 = vmatpush.msra.mxu0 0.0
        %376 = vmatpush.msra.mxu0 %v327
        %377 = vmatpush.msra.mxu0 %v325
        %378 = vmatmul.f32.gmra.mxu0 %v339
        %v379 = vpop.f32.mrf.mxu0
        %v380 = vadd.f32 0.0, %v379
        %381 = vmatmul.f32.gmra.mxu0 %v342
        %v382 = vpop.f32.mrf.mxu0
        %v383 = vadd.f32 0.0, %v382
        %384 = vmatmul.f32.gmra.mxu0 %v345
        %v385 = vpop.f32.mrf.mxu0
        %v386 = vadd.f32 0.0, %v385
        %387 = vmatmul.f32.gmra.mxu0 %v348
        %v388 = vpop.f32.mrf.mxu0
        %v389 = vadd.f32 0.0, %v388
        %390 = vmatmul.f32.gmra.mxu0 %v351
        %v391 = vpop.f32.mrf.mxu0
        %v392 = vadd.f32 0.0, %v391
        %393 = vmatmul.f32.gmra.mxu0 %v354
        %v394 = vpop.f32.mrf.mxu0
        %v395 = vadd.f32 0.0, %v394
        %396 = vmatmul.f32.gmra.mxu0 %v357
        %v397 = vpop.f32.mrf.mxu0
        %v398 = vadd.f32 0.0, %v397
        %399 = vmatmul.f32.gmra.mxu0 %v360
        %v400 = vpop.f32.mrf.mxu0
        %v401 = vadd.f32 0.0, %v400
        %402 = vdwg.mxu0
        %403 = vmatpush.msra.mxu0 0.0
        %404 = vmatpush.msra.mxu0 0.0
        %405 = vmatpush.msra.mxu0 0.0
        %406 = vmatpush.msra.mxu0 0.0
        %407 = vmatpush.msra.mxu0 0.0
        %408 = vmatpush.msra.mxu0 0.0
        %409 = vmatpush.msra.mxu0 0.0
        %410 = vmatpush.msra.mxu0 0.0
        %411 = vmatpush.msra.mxu0 0.0
        %412 = vmatpush.msra.mxu0 0.0
        %413 = vmatpush.msra.mxu0 0.0
        %414 = vmatpush.msra.mxu0 0.0
        %415 = vmatpush.msra.mxu0 0.0
        %416 = vmatpush.msra.mxu0 0.0
        %417 = vmatpush.msra.mxu0 %v328
        %418 = vmatpush.msra.mxu0 %v326
        %419 = vmatmul.f32.gmra.mxu0 %v339
        %v420 = vpop.f32.mrf.mxu0
        %v421 = vadd.f32 0.0, %v420
        %422 = vmatmul.f32.gmra.mxu0 %v342
        %v423 = vpop.f32.mrf.mxu0
        %v424 = vadd.f32 0.0, %v423
        %425 = vmatmul.f32.gmra.mxu0 %v345
        %v426 = vpop.f32.mrf.mxu0
        %v427 = vadd.f32 0.0, %v426
        %428 = vmatmul.f32.gmra.mxu0 %v348
        %v429 = vpop.f32.mrf.mxu0
        %v430 = vadd.f32 0.0, %v429
        %431 = vmatmul.f32.gmra.mxu0 %v351
        %v432 = vpop.f32.mrf.mxu0
        %v433 = vadd.f32 0.0, %v432
        %434 = vmatmul.f32.gmra.mxu0 %v354
        %v435 = vpop.f32.mrf.mxu0
        %v436 = vadd.f32 0.0, %v435
        %437 = vmatmul.f32.gmra.mxu0 %v357
        %v438 = vpop.f32.mrf.mxu0
        %v439 = vadd.f32 0.0, %v438
        %440 = vmatmul.f32.gmra.mxu0 %v360
        %v441 = vpop.f32.mrf.mxu0
        %v442 = vadd.f32 0.0, %v441
        %443 = vdwg.mxu0
        %v444 = vmul.f32 %v380, %v304
        %v445 = vmul.f32 %v421, %v305
        %v446 = vmul.f32 %v383, %v306
        %v447 = vmul.f32 %v424, %v307
        %v448 = vmul.f32 %v386, %v304
        %v449 = vmul.f32 %v427, %v305
        %v450 = vmul.f32 %v389, %v306
        %v451 = vmul.f32 %v430, %v307
        %v452 = vmul.f32 %v392, %v304
        %v453 = vmul.f32 %v433, %v305
        %v454 = vmul.f32 %v395, %v306
        %v455 = vmul.f32 %v436, %v307
        %v456 = vmul.f32 %v398, %v304
        %v457 = vmul.f32 %v439, %v305
        %v458 = vmul.f32 %v401, %v306
        %v459 = vmul.f32 %v442, %v307
        %v460 = vadd.f32 %v444, %v446
        %v461 = vrot.slane %v460, 4
        %v462 = vadd.f32 %v460, %v461
        %v463 = vrot.slane %v462, 2
        %v464 = vadd.f32 %v462, %v463
        %v465 = vrot.slane %v464, 1
        %v466 = vadd.f32 %v464, %v465
        %v467 = vadd.f32 %v445, %v447
        %v468 = vrot.slane %v467, 4
        %v469 = vadd.f32 %v467, %v468
        %v470 = vrot.slane %v469, 2
        %v471 = vadd.f32 %v469, %v470
        %v472 = vrot.slane %v471, 1
        %v473 = vadd.f32 %v471, %v472
        %v474 = vadd.f32 %v448, %v450
        %v475 = vrot.slane %v474, 4
        %v476 = vadd.f32 %v474, %v475
        %v477 = vrot.slane %v476, 2
        %v478 = vadd.f32 %v476, %v477
        %v479 = vrot.slane %v478, 1
        %v480 = vadd.f32 %v478, %v479
        %v481 = vadd.f32 %v449, %v451
        %v482 = vrot.slane %v481, 4
        %v483 = vadd.f32 %v481, %v482
        %v484 = vrot.slane %v483, 2
        %v485 = vadd.f32 %v483, %v484
        %v486 = vrot.slane %v485, 1
        %v487 = vadd.f32 %v485, %v486
        %v488 = vadd.f32 %v452, %v454
        %v489 = vrot.slane %v488, 4
        %v490 = vadd.f32 %v488, %v489
        %v491 = vrot.slane %v490, 2
        %v492 = vadd.f32 %v490, %v491
        %v493 = vrot.slane %v492, 1
        %v494 = vadd.f32 %v492, %v493
        %v495 = vadd.f32 %v453, %v455
        %v496 = vrot.slane %v495, 4
        %v497 = vadd.f32 %v495, %v496
        %v498 = vrot.slane %v497, 2
        %v499 = vadd.f32 %v497, %v498
        %v500 = vrot.slane %v499, 1
        %v501 = vadd.f32 %v499, %v500
        %v502 = vadd.f32 %v456, %v458
        %v503 = vrot.slane %v502, 4
        %v504 = vadd.f32 %v502, %v503
        %v505 = vrot.slane %v504, 2
        %v506 = vadd.f32 %v504, %v505
        %v507 = vrot.slane %v506, 1
        %v508 = vadd.f32 %v506, %v507
        %v509 = vadd.f32 %v457, %v459
        %v510 = vrot.slane %v509, 4
        %v511 = vadd.f32 %v509, %v510
        %v512 = vrot.slane %v511, 2
        %v513 = vadd.f32 %v511, %v512
        %v514 = vrot.slane %v513, 1
        %v515 = vadd.f32 %v513, %v514
        %v524 = vrot.slane %v473, 4
        %v525 = vrot.slane %v487, 4
        %v526 = vrot.slane %v501, 4
        %v527 = vrot.slane %v515, 4
        %vm528 = vcmask 1043456
        %v529 = vsel %vm528, %v466, %v524
        %v530 = vsel %vm528, %v480, %v525
        %v531 = vsel %vm528, %v494, %v526
        %v532 = vsel %vm528, %v508, %v527
        %v533 = vrot.slane %v530, 7
        %vm534 = vcmask 1041409
        %v535 = vsel %vm534, %v533, %v529
        %vm536 = vcmask 1045509
        %v537 = vsel %vm536, %v533, %v535
        %v538 = vrot.slane %v531, 6
        %vm539 = vcmask 1042434
        %v540 = vsel %vm539, %v538, %v537
        %vm541 = vcmask 1046534
        %v542 = vsel %vm541, %v538, %v540
        %v543 = vrot.slane %v532, 5
        %vm544 = vcmask 1043459
        %v545 = vsel %vm544, %v543, %v542
        %vm546 = vcmask 1047559
        %v547 = vsel %vm546, %v543, %v545
        %549 = vst [vmem:[%s270] sm:$0xff] %v547
        %s550 = sand.u32 %s123, 1
        %s551 = scalar_lea.sflag [#allocation4], %s550
        %s552 = sand.u32 %s123, 1
        %s553 = smul.addr %s552, 8
        %s554 = scalar_lea.vmem [#allocation8], %s553
        // Predicated region
        $region45: #{tpu_custom_call.1} parent=31 // pred_check
          %p555 = pneg %p133
        $region46: #{tpu_custom_call.1} parent=31 // pred_check_branch
          %557 = sbr.rel (%p555) target = $region48
        $region47: #{tpu_custom_call.1} parent=31 // pred_region
          %s558 = smul.u32 2, %s26
          %560 = vsyncadd %s551, 0
          %s561 = smul.addr %s25, 2
          %s562 = sadd.s32 %s558, %s561
          %s563 = smul.addr %s562, 4
          %s564 = scalar_lea.hbm %s3, %s563
          %s566 = sshll.u32 %s554, 4
          %s567 = int_to_ptr.vmem [resolvable:$true] %s566
          %s568 = sshll.u32 %s564, 4
          %s569 = int_to_ptr.hbm [resolvable:$true] %s568
          %571 = dma.vmem_to_hbm [thread:$0]  %s567, 128, %s569, %s551
        $region48: #{tpu_custom_call.1} parent=31 // pred_fallthru
          _
      $region32: #{tpu_custom_call.1} parent=5 // pred_fallthru
        _
      %p572 = scmp.le.s32.totalorder 2, %s16
      // Predicated region
      $region49: #{tpu_custom_call.1} parent=5 // pred_check
        %p573 = pneg %p572
      $region50: #{tpu_custom_call.1} parent=5 // pred_check_branch
        %575 = sbr.rel (%p573) target = $region52
      $region51: #{tpu_custom_call.1} parent=5 // pred_region
        %s576 = ssub.s32 %s16, 2
        // Predicated region
        $region53: #{tpu_custom_call.1} parent=51 // pred_check
          %p577 = pneg %p139
        $region54: #{tpu_custom_call.1} parent=51 // pred_check_branch
          %579 = sbr.rel (%p577) target = $region56
        $region55: #{tpu_custom_call.1} parent=51 // pred_region
          %s580 = sand.u32 %s124, 1
          %s581 = scalar_lea.sflag [#allocation4], %s580
          %s582 = sand.u32 %s124, 1
          %s583 = smul.addr %s582, 8
          %s584 = scalar_lea.vmem [#allocation8], %s583
          %586 = dma.done %s581, 128
        $region56: #{tpu_custom_call.1} parent=51 // pred_fallthru
          _
      $region52: #{tpu_custom_call.1} parent=5 // pred_fallthru
        _
    $region6: #{tpu_custom_call.1} parent=1 // loop_footer
      %s20 = sadd.s32 1, %s16
    $region7: #{tpu_custom_call.1} parent=1 // loop_footer_branch
      %15 = sbr.rel target = $region3
    $region8: #{tpu_custom_call.1} parent=1 // loop_exit
      _
    %587 = vsyncpa [#allocation3], 1
    %s588 = scalar_lea.sflag [#allocation3], 1
    %589 = vsyncpa %s588, 1
    %590 = vsyncpa [#allocation6], 1
    %s591 = scalar_lea.sflag [#allocation6], 1
    %592 = vsyncpa %s591, 1
    %593 = vsyncpa [#allocation4], 1
    %s594 = scalar_lea.sflag [#allocation4], 1
    %595 = vsyncpa %s594, 1

</llo_original>
